<compile_context>
chip_gen: v7x
topology: tpu7x:2x2x1
jax: 0.10.0
libtpu: 0.0.40
codegen_flags: <defaults>
</compile_context>

<pallas_src>
import functools

import jax
import jax.numpy as jnp
from jax.experimental import pallas as pl
from jax.experimental.pallas import tpu as pltpu


def _pad_kernel(x_ref, o_ref, *, h, w, top, bottom, left, right):
    # x_ref: (c_blk, H*W) lane-dense block of flattened input planes.
    # o_ref: (c_blk, H_out*W_out) lane-dense block of flattened padded planes.
    cb = x_ref.shape[0]
    dt = x_ref.dtype
    w_out = w + left + right

    x = x_ref[...].reshape(cb, h, w)

    # Pad W by concatenating zero strips in vregs (exact constant-0 pad).
    if left or right:
        parts = []
        if left:
            parts.append(jnp.zeros((cb, h, left), dt))
        parts.append(x)
        if right:
            parts.append(jnp.zeros((cb, h, right), dt))
        x = jnp.concatenate(parts, axis=-1)

    # Rows are contiguous in the flattened plane, so top/bottom padding is a
    # contiguous zero run at the front/back of the flat axis.
    x = x.reshape(cb, h * w_out)
    if top or bottom:
        parts = []
        if top:
            parts.append(jnp.zeros((cb, top * w_out), dt))
        parts.append(x)
        if bottom:
            parts.append(jnp.zeros((cb, bottom * w_out), dt))
        x = jnp.concatenate(parts, axis=-1)

    # Single dense store of the whole padded block (no zero-fill-then-overwrite).
    o_ref[...] = x


def _round_up(a, m):
    return ((a + m - 1) // m) * m


def _vmem_capacity_bytes():
    try:
        return int(pltpu.get_tpu_info().vmem_capacity_bytes)
    except Exception:
        return 64 << 20  # conservative fallback (v7x-sized per-core VMEM)


def custom_pad(x, padding):
    """Equivalent of nn.functional.pad(x, padding) for 4D NCHW input.

    padding: (left, right) or (left, right, top, bottom), non-negative ints.
    """
    assert x.ndim == 4, "expect NCHW input"
    if len(padding) == 2:
        left, right = padding
        top = bottom = 0
    elif len(padding) == 4:
        left, right, top, bottom = padding
    else:
        raise ValueError("padding must have length 2 or 4")
    # TODO(synk): negative (crop) padding and padding of non-spatial (N/C) dims not implemented.
    assert min(left, right, top, bottom) >= 0

    N, C, H, W = x.shape
    H_out = H + top + bottom
    W_out = W + left + right
    NC = N * C
    HW = H * W
    HW_out = H_out * W_out

    # ---- Block sizing against real (tile-padded) VMEM usage ----------------
    itemsize = jnp.dtype(x.dtype).itemsize
    lane = 128
    sublane = max(8, 32 // itemsize)  # 8 f32 / 16 bf16 / 32 int8 sublane tile

    # HBM-facing blocks are double-buffered by the pipeline.
    io_per_chan = 2 * (_round_up(HW, lane) + _round_up(HW_out, lane)) * itemsize
    # In-kernel relayout intermediates (conservatively summed, per channel).
    tmp_per_chan = (
        _round_up(H, sublane) * _round_up(W, lane)        # (cb, H, W)
        + _round_up(H, sublane) * _round_up(W_out, lane)  # (cb, H, W_out)
        + _round_up(H * W_out, lane)                      # (cb, H*W_out)
        + _round_up(HW_out, lane)                         # (cb, H_out*W_out)
    ) * itemsize
    per_chan = io_per_chan + tmp_per_chan

    phys_vmem = _vmem_capacity_bytes()
    vmem_limit = min(phys_vmem // 2, 64 << 20)   # 64 MiB on v5e/v6e, 32 MiB on v7x
    vmem_budget = (vmem_limit * 3) // 4          # headroom under the scoped limit

    cap = max(1, vmem_budget // per_chan)
    c_blk = min(NC, cap)
    if c_blk < NC:
        # Keep the second-minor block dim a multiple of the sublane tile.
        c_blk = min(NC, max(sublane, (c_blk // sublane) * sublane))

    # Dual-TC (v7x) split: only if each half still meets a ~1 MiB output target.
    target_out_bytes = 1 << 20
    if c_blk >= NC and NC >= 2:
        half = (NC + 1) // 2
        if half * HW_out * itemsize >= target_out_bytes:
            c_half = min(NC, _round_up(half, sublane))
            if c_half < NC:
                c_blk = c_half

    grid = (pl.cdiv(NC, c_blk),)  # ragged last block is masked by Pallas

    # Collapse (N, C) -> NC and flatten spatial dims: free row-major reshapes
    # that make the HBM-facing last dim lane-dense.
    x_flat = x.reshape(NC, HW)

    kernel = functools.partial(
        _pad_kernel, h=H, w=W, top=top, bottom=bottom, left=left, right=right
    )

    out_flat = pl.pallas_call(
        kernel,
        out_shape=jax.ShapeDtypeStruct((NC, HW_out), x.dtype),
        grid_spec=pltpu.PrefetchScalarGridSpec(
            num_scalar_prefetch=0,
            grid=grid,
            in_specs=[
                pl.BlockSpec((c_blk, HW), lambda i: (i, 0)),
            ],
            out_specs=pl.BlockSpec((c_blk, HW_out), lambda i: (i, 0)),
        ),
        compiler_params=pltpu.CompilerParams(
            dimension_semantics=("parallel",),
            vmem_limit_bytes=int(vmem_limit),
        ),
    )(x_flat)

    return out_flat.reshape(N, C, H_out, W_out)


if __name__ == "__main__":
    key = jax.random.PRNGKey(0)
    # Small NCHW input consistent with the module's usage in EEG-Inception.
    x = jax.random.normal(key, (2, 4, 16, 16), dtype=jnp.float32)
    padding = (2, 3, 1, 2)  # (left, right, top, bottom)

    y = custom_pad(x, padding)
    y = jax.block_until_ready(y)

    # Reference check against jnp.pad (same semantics as F.pad constant-0).
    left, right, top, bottom = padding
    y_ref = jnp.pad(x, ((0, 0), (0, 0), (top, bottom), (left, right)))
    assert y.shape == y_ref.shape, (y.shape, y_ref.shape)
    assert jnp.allclose(y, y_ref), "mismatch vs jnp.pad reference"

    # Also exercise the len-2 padding path (pads only W, like PyTorch).
    y2 = jax.block_until_ready(custom_pad(x, (1, 4)))
    y2_ref = jnp.pad(x, ((0, 0), (0, 0), (0, 0), (1, 4)))
    assert jnp.allclose(y2, y2_ref), "mismatch vs jnp.pad reference (len-2 padding)"

    # Zero-padding degenerate case (pure copy path).
    y3 = jax.block_until_ready(custom_pad(x, (0, 0, 0, 0)))
    assert jnp.allclose(y3, x), "mismatch for zero padding"

    print("KERNEL_OK")
</pallas_src>

<mosaic_0001>
module attributes {stable_mosaic.version = 11 : i64} {
  func.func @_pad_kernel(%arg0: i32, %arg1: memref<8x256xf32, #tpu.memory_space<vmem>>, %arg2: memref<8x399xf32, #tpu.memory_space<vmem>>) attributes {dimension_semantics = [#tpu.dimension_semantics<parallel>], iteration_bounds = array<i64: 1>, scalar_prefetch = 0 : i64, scratch_operands = 0 : i64, tpu.core_type = #tpu.core_type<tc>, window_params = [{transform_indices = @transform_0, window_bounds = array<i64: 8, 256>}, {transform_indices = @transform_1, window_bounds = array<i64: 8, 399>}]} {
    %c0 = arith.constant 0 : index
    %c0_0 = arith.constant 0 : index
    %0 = vector.load %arg1[%c0, %c0_0] : memref<8x256xf32, #tpu.memory_space<vmem>>, vector<8x256xf32>
    %1 = vector.shape_cast %0 : vector<8x256xf32> to vector<8x16x16xf32>
    %cst = arith.constant 0.000000e+00 : f32
    %2 = vector.broadcast %cst : f32 to vector<8x16x2xf32>
    %cst_1 = arith.constant 0.000000e+00 : f32
    %3 = vector.broadcast %cst_1 : f32 to vector<8x16x3xf32>
    %4 = tpu.concatenate %2, %1, %3 in 2 : vector<8x16x2xf32>, vector<8x16x16xf32>, vector<8x16x3xf32> -> vector<8x16x21xf32>
    %5 = vector.shape_cast %4 : vector<8x16x21xf32> to vector<8x336xf32>
    %cst_2 = arith.constant 0.000000e+00 : f32
    %6 = vector.broadcast %cst_2 : f32 to vector<8x21xf32>
    %cst_3 = arith.constant 0.000000e+00 : f32
    %7 = vector.broadcast %cst_3 : f32 to vector<8x42xf32>
    %8 = tpu.concatenate %6, %5, %7 in 1 : vector<8x21xf32>, vector<8x336xf32>, vector<8x42xf32> -> vector<8x399xf32>
    %c0_4 = arith.constant 0 : index
    %c0_5 = arith.constant 0 : index
    %9 = vector.load %arg2[%c0_4, %c0_5] : memref<8x399xf32, #tpu.memory_space<vmem>>, vector<8x399xf32>
    tpu.vector_store %arg2[%c0_4, %c0_5], %8 {strides = array<i32>} : memref<8x399xf32, #tpu.memory_space<vmem>>, vector<8x399xf32>,
    return
  }
  func.func @transform_0(%arg0: i32) -> (i32, i32) {
    %c0_i32 = arith.constant 0 : i32
    %c0_i32_0 = arith.constant 0 : i32
    return %arg0, %c0_i32 : i32, i32
  }
  func.func @transform_1(%arg0: i32) -> (i32, i32) {
    %c0_i32 = arith.constant 0 : i32
    %c0_i32_0 = arith.constant 0 : i32
    return %arg0, %c0_i32 : i32, i32
  }
}

</mosaic_0001>

<llo_original>
// kernel: tpu_custom_call.1
$region0: #{tpu_custom_call.1}
  #allocation0 [shape = 'u32[]', space=smem, size = 0x4, offset = 0x4, fixed_abs, tag = 'smem constant byte address 0x4 - core index']
  #allocation1 [shape = 'u32[144,128]{1,0:T(1,128)}', space=vmem, size = 0x12000, scoped, tag = 'internal scratch']
  %s0 = inlined_call_operand.hbm [shape: f32[8,256], index: 0, kind: input, shape index: {}]
  %s1 = inlined_call_operand.hbm [shape: f32[8,399], index: 1, kind: output, shape index: {}]
  %s2 = sld [smem:[#allocation0]]
  $region18: #{tpu_custom_call.1} parent=0
    _
  %s4 = ssub.s32 1, %s2
  %s5 = scalar_select 0, %s4, %s2
  $region1: #{tpu_custom_call.1} parent=0
    #allocation2 [shape = 'u8[8192]{0}', space=vmem, size = 0x2000, scoped, tag = 'input window, operand 0, single buffered']
    #allocation3 [shape = 's32[1]{0}', space=sflag, size = 0x4, scoped, tag = 'scoped memory for tpu_custom_call.1']
    #allocation4 [shape = 's32[1]{0}', space=sflag, size = 0x4, scoped, tag = 'scoped memory for tpu_custom_call.1']
    #allocation5 [shape = 'u8[16384]{0}', space=vmem, size = 0x4000, scoped, tag = 'output window, operand 0, single buffered']
    %6 = vsyncpa [#allocation3], 0
    %7 = vsyncpa [#allocation4], 0
    // Predicated region
    $region2: #{tpu_custom_call.1} parent=1 // pred_check
      _
    $region3: #{tpu_custom_call.1} parent=1 // pred_check_branch
      %9 = sbr.rel (0) target = $region5
    $region4: #{tpu_custom_call.1} parent=1 // pred_region
      %s11 = ssub.s32 256, 256
      %12 = vsyncadd [#allocation3], %s11
      %s14 = sshll.u32 [#allocation2], 4
      %s15 = int_to_ptr.vmem [resolvable:$true] %s14
      %17 = dma.hbm_to_vmem [thread:$0]  %s0, 256, %s15, [#allocation3]
    $region5: #{tpu_custom_call.1} parent=1 // pred_fallthru
      _
    // Predicated region
    $region6: #{tpu_custom_call.1} parent=1 // pred_check
      _
    $region7: #{tpu_custom_call.1} parent=1 // pred_check_branch
      %19 = sbr.rel (0) target = $region9
    $region8: #{tpu_custom_call.1} parent=1 // pred_region
      %20 = dma.done [#allocation3], 256
    $region9: #{tpu_custom_call.1} parent=1 // pred_fallthru
      _
    %v21 = vld [vmem:[#allocation2] sm:$0xff]
    %v22 = vld [vmem:[#allocation2 + $0x8] sm:$0xff]
    %24 = vrot.lane.b32.xlu0 %v21, 112
    %v25 = vpop.permute.xlu0 %24
    %27 = vrot.lane.b32.xlu0 %v21, 96
    %v28 = vpop.permute.xlu0 %27
    %30 = vrot.lane.b32.xlu0 %v21, 80
    %v31 = vpop.permute.xlu0 %30
    %33 = vrot.lane.b32.xlu0 %v21, 64
    %v34 = vpop.permute.xlu0 %33
    %36 = vrot.lane.b32.xlu0 %v21, 48
    %v37 = vpop.permute.xlu0 %36
    %39 = vrot.lane.b32.xlu0 %v21, 32
    %v40 = vpop.permute.xlu0 %39
    %42 = vrot.lane.b32.xlu0 %v21, 16
    %v43 = vpop.permute.xlu0 %42
    %46 = vrot.lane.b32.xlu0 %v22, 112
    %v47 = vpop.permute.xlu0 %46
    %49 = vrot.lane.b32.xlu0 %v22, 96
    %v50 = vpop.permute.xlu0 %49
    %52 = vrot.lane.b32.xlu0 %v22, 80
    %v53 = vpop.permute.xlu0 %52
    %55 = vrot.lane.b32.xlu0 %v22, 64
    %v56 = vpop.permute.xlu0 %55
    %58 = vrot.lane.b32.xlu0 %v22, 48
    %v59 = vpop.permute.xlu0 %58
    %61 = vrot.lane.b32.xlu0 %v22, 32
    %v62 = vpop.permute.xlu0 %61
    %64 = vrot.lane.b32.xlu0 %v22, 16
    %v65 = vpop.permute.xlu0 %64
    %v67 = vcombine.low %v21, %v28
    %v68 = vcombine.high %v21, %v28
    %v70 = vunpack.c.l.s4 1983009808
    %v71 = vunpack.c.0.s8 %v70
    %v72 = vlaneseq
    %v73 = vshrl.u32 %v72, 7
    %v74 = vsub.s32 %v71, %v73
    %v75 = vrot.slane %v67, %v74
    %v77 = vunpack.c.l.s4 1983009808
    %v78 = vunpack.c.0.s8 %v77
    %v79 = vlaneseq
    %v80 = vshrl.u32 %v79, 7
    %v81 = vsub.s32 %v78, %v80
    %v82 = vrot.slane %v68, %v81
    %v83 = vcombine.low %v25, %v31
    %v84 = vcombine.high %v25, %v31
    %v86 = vunpack.c.l.s4 1983009808
    %v87 = vunpack.c.0.s8 %v86
    %v88 = vlaneseq
    %v89 = vshrl.u32 %v88, 7
    %v90 = vsub.s32 %v87, %v89
    %v91 = vrot.slane %v83, %v90
    %v93 = vunpack.c.l.s4 1983009808
    %v94 = vunpack.c.0.s8 %v93
    %v95 = vlaneseq
    %v96 = vshrl.u32 %v95, 7
    %v97 = vsub.s32 %v94, %v96
    %v98 = vrot.slane %v84, %v97
    %v99 = vcombine.low %v34, %v40
    %v100 = vcombine.high %v34, %v40
    %v102 = vunpack.c.l.s4 1983009808
    %v103 = vunpack.c.0.s8 %v102
    %v104 = vlaneseq
    %v105 = vshrl.u32 %v104, 7
    %v106 = vsub.s32 %v103, %v105
    %v107 = vrot.slane %v99, %v106
    %v109 = vunpack.c.l.s4 1983009808
    %v110 = vunpack.c.0.s8 %v109
    %v111 = vlaneseq
    %v112 = vshrl.u32 %v111, 7
    %v113 = vsub.s32 %v110, %v112
    %v114 = vrot.slane %v100, %v113
    %v115 = vcombine.low %v37, %v43
    %v116 = vcombine.high %v37, %v43
    %v118 = vunpack.c.l.s4 1983009808
    %v119 = vunpack.c.0.s8 %v118
    %v120 = vlaneseq
    %v121 = vshrl.u32 %v120, 7
    %v122 = vsub.s32 %v119, %v121
    %v123 = vrot.slane %v115, %v122
    %v125 = vunpack.c.l.s4 1983009808
    %v126 = vunpack.c.0.s8 %v125
    %v127 = vlaneseq
    %v128 = vshrl.u32 %v127, 7
    %v129 = vsub.s32 %v126, %v128
    %v130 = vrot.slane %v116, %v129
    %v131 = vcombine.low %v75, %v91
    %v132 = vcombine.high %v75, %v91
    %v134 = vunpack.c.l.s4 1934713408
    %v135 = vunpack.c.0.s8 %v134
    %v136 = vlaneseq
    %v137 = vshrl.u32 %v136, 7
    %v138 = vsub.s32 %v135, %v137
    %v139 = vrot.slane %v131, %v138
    %v141 = vunpack.c.l.s4 1934713408
    %v142 = vunpack.c.0.s8 %v141
    %v143 = vlaneseq
    %v144 = vshrl.u32 %v143, 7
    %v145 = vsub.s32 %v142, %v144
    %v146 = vrot.slane %v132, %v145
    %v147 = vcombine.low %v82, %v98
    %v148 = vcombine.high %v82, %v98
    %v150 = vunpack.c.l.s4 1934713408
    %v151 = vunpack.c.0.s8 %v150
    %v152 = vlaneseq
    %v153 = vshrl.u32 %v152, 7
    %v154 = vsub.s32 %v151, %v153
    %v155 = vrot.slane %v147, %v154
    %v157 = vunpack.c.l.s4 1934713408
    %v158 = vunpack.c.0.s8 %v157
    %v159 = vlaneseq
    %v160 = vshrl.u32 %v159, 7
    %v161 = vsub.s32 %v158, %v160
    %v162 = vrot.slane %v148, %v161
    %v163 = vcombine.low %v107, %v123
    %v164 = vcombine.high %v107, %v123
    %v166 = vunpack.c.l.s4 1934713408
    %v167 = vunpack.c.0.s8 %v166
    %v168 = vlaneseq
    %v169 = vshrl.u32 %v168, 7
    %v170 = vsub.s32 %v167, %v169
    %v171 = vrot.slane %v163, %v170
    %v173 = vunpack.c.l.s4 1934713408
    %v174 = vunpack.c.0.s8 %v173
    %v175 = vlaneseq
    %v176 = vshrl.u32 %v175, 7
    %v177 = vsub.s32 %v174, %v176
    %v178 = vrot.slane %v164, %v177
    %v179 = vcombine.low %v114, %v130
    %v180 = vcombine.high %v114, %v130
    %v182 = vunpack.c.l.s4 1934713408
    %v183 = vunpack.c.0.s8 %v182
    %v184 = vlaneseq
    %v185 = vshrl.u32 %v184, 7
    %v186 = vsub.s32 %v183, %v185
    %v187 = vrot.slane %v179, %v186
    %v189 = vunpack.c.l.s4 1934713408
    %v190 = vunpack.c.0.s8 %v189
    %v191 = vlaneseq
    %v192 = vshrl.u32 %v191, 7
    %v193 = vsub.s32 %v190, %v192
    %v194 = vrot.slane %v180, %v193
    %v195 = vcombine.low %v139, %v171
    %v196 = vcombine.high %v139, %v171
    %v197 = vcombine.low %v146, %v178
    %v198 = vcombine.high %v146, %v178
    %v199 = vcombine.low %v155, %v187
    %v200 = vcombine.high %v155, %v187
    %v201 = vcombine.low %v162, %v194
    %v202 = vcombine.high %v162, %v194
    %v203 = vcombine.low %v22, %v50
    %v204 = vcombine.high %v22, %v50
    %v206 = vunpack.c.l.s4 1983009808
    %v207 = vunpack.c.0.s8 %v206
    %v208 = vlaneseq
    %v209 = vshrl.u32 %v208, 7
    %v210 = vsub.s32 %v207, %v209
    %v211 = vrot.slane %v203, %v210
    %v213 = vunpack.c.l.s4 1983009808
    %v214 = vunpack.c.0.s8 %v213
    %v215 = vlaneseq
    %v216 = vshrl.u32 %v215, 7
    %v217 = vsub.s32 %v214, %v216
    %v218 = vrot.slane %v204, %v217
    %v219 = vcombine.low %v47, %v53
    %v220 = vcombine.high %v47, %v53
    %v222 = vunpack.c.l.s4 1983009808
    %v223 = vunpack.c.0.s8 %v222
    %v224 = vlaneseq
    %v225 = vshrl.u32 %v224, 7
    %v226 = vsub.s32 %v223, %v225
    %v227 = vrot.slane %v219, %v226
    %v229 = vunpack.c.l.s4 1983009808
    %v230 = vunpack.c.0.s8 %v229
    %v231 = vlaneseq
    %v232 = vshrl.u32 %v231, 7
    %v233 = vsub.s32 %v230, %v232
    %v234 = vrot.slane %v220, %v233
    %v235 = vcombine.low %v56, %v62
    %v236 = vcombine.high %v56, %v62
    %v238 = vunpack.c.l.s4 1983009808
    %v239 = vunpack.c.0.s8 %v238
    %v240 = vlaneseq
    %v241 = vshrl.u32 %v240, 7
    %v242 = vsub.s32 %v239, %v241
    %v243 = vrot.slane %v235, %v242
    %v245 = vunpack.c.l.s4 1983009808
    %v246 = vunpack.c.0.s8 %v245
    %v247 = vlaneseq
    %v248 = vshrl.u32 %v247, 7
    %v249 = vsub.s32 %v246, %v248
    %v250 = vrot.slane %v236, %v249
    %v251 = vcombine.low %v59, %v65
    %v252 = vcombine.high %v59, %v65
    %v254 = vunpack.c.l.s4 1983009808
    %v255 = vunpack.c.0.s8 %v254
    %v256 = vlaneseq
    %v257 = vshrl.u32 %v256, 7
    %v258 = vsub.s32 %v255, %v257
    %v259 = vrot.slane %v251, %v258
    %v261 = vunpack.c.l.s4 1983009808
    %v262 = vunpack.c.0.s8 %v261
    %v263 = vlaneseq
    %v264 = vshrl.u32 %v263, 7
    %v265 = vsub.s32 %v262, %v264
    %v266 = vrot.slane %v252, %v265
    %v267 = vcombine.low %v211, %v227
    %v268 = vcombine.high %v211, %v227
    %v270 = vunpack.c.l.s4 1934713408
    %v271 = vunpack.c.0.s8 %v270
    %v272 = vlaneseq
    %v273 = vshrl.u32 %v272, 7
    %v274 = vsub.s32 %v271, %v273
    %v275 = vrot.slane %v267, %v274
    %v277 = vunpack.c.l.s4 1934713408
    %v278 = vunpack.c.0.s8 %v277
    %v279 = vlaneseq
    %v280 = vshrl.u32 %v279, 7
    %v281 = vsub.s32 %v278, %v280
    %v282 = vrot.slane %v268, %v281
    %v283 = vcombine.low %v218, %v234
    %v284 = vcombine.high %v218, %v234
    %v286 = vunpack.c.l.s4 1934713408
    %v287 = vunpack.c.0.s8 %v286
    %v288 = vlaneseq
    %v289 = vshrl.u32 %v288, 7
    %v290 = vsub.s32 %v287, %v289
    %v291 = vrot.slane %v283, %v290
    %v293 = vunpack.c.l.s4 1934713408
    %v294 = vunpack.c.0.s8 %v293
    %v295 = vlaneseq
    %v296 = vshrl.u32 %v295, 7
    %v297 = vsub.s32 %v294, %v296
    %v298 = vrot.slane %v284, %v297
    %v299 = vcombine.low %v243, %v259
    %v300 = vcombine.high %v243, %v259
    %v302 = vunpack.c.l.s4 1934713408
    %v303 = vunpack.c.0.s8 %v302
    %v304 = vlaneseq
    %v305 = vshrl.u32 %v304, 7
    %v306 = vsub.s32 %v303, %v305
    %v307 = vrot.slane %v299, %v306
    %v309 = vunpack.c.l.s4 1934713408
    %v310 = vunpack.c.0.s8 %v309
    %v311 = vlaneseq
    %v312 = vshrl.u32 %v311, 7
    %v313 = vsub.s32 %v310, %v312
    %v314 = vrot.slane %v300, %v313
    %v315 = vcombine.low %v250, %v266
    %v316 = vcombine.high %v250, %v266
    %v318 = vunpack.c.l.s4 1934713408
    %v319 = vunpack.c.0.s8 %v318
    %v320 = vlaneseq
    %v321 = vshrl.u32 %v320, 7
    %v322 = vsub.s32 %v319, %v321
    %v323 = vrot.slane %v315, %v322
    %v325 = vunpack.c.l.s4 1934713408
    %v326 = vunpack.c.0.s8 %v325
    %v327 = vlaneseq
    %v328 = vshrl.u32 %v327, 7
    %v329 = vsub.s32 %v326, %v328
    %v330 = vrot.slane %v316, %v329
    %v331 = vcombine.low %v275, %v307
    %v332 = vcombine.high %v275, %v307
    %v333 = vcombine.low %v282, %v314
    %v334 = vcombine.high %v282, %v314
    %v335 = vcombine.low %v291, %v323
    %v336 = vcombine.high %v291, %v323
    %v337 = vcombine.low %v298, %v330
    %v338 = vcombine.high %v298, %v330
    %355 = vrot.lane.b32.xlu0 %v195, 2
    %v356 = vpop.permute.xlu0 %355
    %357 = vrot.lane.b32.xlu0 %v331, 2
    %v358 = vpop.permute.xlu0 %357
    %359 = vrot.lane.b32.xlu0 %v196, 2
    %v360 = vpop.permute.xlu0 %359
    %361 = vrot.lane.b32.xlu0 %v332, 2
    %v362 = vpop.permute.xlu0 %361
    %363 = vrot.lane.b32.xlu0 %v197, 2
    %v364 = vpop.permute.xlu0 %363
    %365 = vrot.lane.b32.xlu0 %v333, 2
    %v366 = vpop.permute.xlu0 %365
    %367 = vrot.lane.b32.xlu0 %v198, 2
    %v368 = vpop.permute.xlu0 %367
    %369 = vrot.lane.b32.xlu0 %v334, 2
    %v370 = vpop.permute.xlu0 %369
    %371 = vrot.lane.b32.xlu0 %v199, 2
    %v372 = vpop.permute.xlu0 %371
    %373 = vrot.lane.b32.xlu0 %v335, 2
    %v374 = vpop.permute.xlu0 %373
    %375 = vrot.lane.b32.xlu0 %v200, 2
    %v376 = vpop.permute.xlu0 %375
    %377 = vrot.lane.b32.xlu0 %v336, 2
    %v378 = vpop.permute.xlu0 %377
    %379 = vrot.lane.b32.xlu0 %v201, 2
    %v380 = vpop.permute.xlu0 %379
    %381 = vrot.lane.b32.xlu0 %v337, 2
    %v382 = vpop.permute.xlu0 %381
    %383 = vrot.lane.b32.xlu0 %v202, 2
    %v384 = vpop.permute.xlu0 %383
    %385 = vrot.lane.b32.xlu0 %v338, 2
    %v386 = vpop.permute.xlu0 %385
    %vm403 = vcmask 15360
    %v404 = vsel %vm403, 0.0, %v356
    %v405 = vsel %vm403, 0.0, %v358
    %v406 = vsel %vm403, 0.0, %v360
    %v407 = vsel %vm403, 0.0, %v362
    %v408 = vsel %vm403, 0.0, %v364
    %v409 = vsel %vm403, 0.0, %v366
    %v410 = vsel %vm403, 0.0, %v368
    %v411 = vsel %vm403, 0.0, %v370
    %v412 = vsel %vm403, 0.0, %v372
    %v413 = vsel %vm403, 0.0, %v374
    %v414 = vsel %vm403, 0.0, %v376
    %v415 = vsel %vm403, 0.0, %v378
    %v416 = vsel %vm403, 0.0, %v380
    %v417 = vsel %vm403, 0.0, %v382
    %v418 = vsel %vm403, 0.0, %v384
    %v419 = vsel %vm403, 0.0, %v386
    %vm420 = vcmask 146432
    %v421 = vsel %vm420, %v404, 0.0
    %v422 = vsel %vm420, %v405, 0.0
    %v423 = vsel %vm420, %v406, 0.0
    %v424 = vsel %vm420, %v407, 0.0
    %v425 = vsel %vm420, %v408, 0.0
    %v426 = vsel %vm420, %v409, 0.0
    %v427 = vsel %vm420, %v410, 0.0
    %v428 = vsel %vm420, %v411, 0.0
    %v429 = vsel %vm420, %v412, 0.0
    %v430 = vsel %vm420, %v413, 0.0
    %v431 = vsel %vm420, %v414, 0.0
    %v432 = vsel %vm420, %v415, 0.0
    %v433 = vsel %vm420, %v416, 0.0
    %v434 = vsel %vm420, %v417, 0.0
    %v435 = vsel %vm420, %v418, 0.0
    %v436 = vsel %vm420, %v419, 0.0
    %v437 = vcombine.low %v421, %v425
    %v438 = vcombine.high %v421, %v425
    %v440 = vunpack.c.l.s4 1983009808
    %v441 = vunpack.c.0.s8 %v440
    %v442 = vlaneseq
    %v443 = vshrl.u32 %v442, 7
    %v444 = vsub.s32 %v441, %v443
    %v445 = vrot.slane %v437, %v444
    %v447 = vunpack.c.l.s4 1983009808
    %v448 = vunpack.c.0.s8 %v447
    %v449 = vlaneseq
    %v450 = vshrl.u32 %v449, 7
    %v451 = vsub.s32 %v448, %v450
    %v452 = vrot.slane %v438, %v451
    %v453 = vcombine.low %v423, %v427
    %v454 = vcombine.high %v423, %v427
    %v456 = vunpack.c.l.s4 1983009808
    %v457 = vunpack.c.0.s8 %v456
    %v458 = vlaneseq
    %v459 = vshrl.u32 %v458, 7
    %v460 = vsub.s32 %v457, %v459
    %v461 = vrot.slane %v453, %v460
    %v463 = vunpack.c.l.s4 1983009808
    %v464 = vunpack.c.0.s8 %v463
    %v465 = vlaneseq
    %v466 = vshrl.u32 %v465, 7
    %v467 = vsub.s32 %v464, %v466
    %v468 = vrot.slane %v454, %v467
    %v469 = vcombine.low %v429, %v433
    %v470 = vcombine.high %v429, %v433
    %v472 = vunpack.c.l.s4 1983009808
    %v473 = vunpack.c.0.s8 %v472
    %v474 = vlaneseq
    %v475 = vshrl.u32 %v474, 7
    %v476 = vsub.s32 %v473, %v475
    %v477 = vrot.slane %v469, %v476
    %v479 = vunpack.c.l.s4 1983009808
    %v480 = vunpack.c.0.s8 %v479
    %v481 = vlaneseq
    %v482 = vshrl.u32 %v481, 7
    %v483 = vsub.s32 %v480, %v482
    %v484 = vrot.slane %v470, %v483
    %v485 = vcombine.low %v431, %v435
    %v486 = vcombine.high %v431, %v435
    %v488 = vunpack.c.l.s4 1983009808
    %v489 = vunpack.c.0.s8 %v488
    %v490 = vlaneseq
    %v491 = vshrl.u32 %v490, 7
    %v492 = vsub.s32 %v489, %v491
    %v493 = vrot.slane %v485, %v492
    %v495 = vunpack.c.l.s4 1983009808
    %v496 = vunpack.c.0.s8 %v495
    %v497 = vlaneseq
    %v498 = vshrl.u32 %v497, 7
    %v499 = vsub.s32 %v496, %v498
    %v500 = vrot.slane %v486, %v499
    %v501 = vcombine.low %v445, %v461
    %v502 = vcombine.high %v445, %v461
    %v504 = vunpack.c.l.s4 1934713408
    %v505 = vunpack.c.0.s8 %v504
    %v506 = vlaneseq
    %v507 = vshrl.u32 %v506, 7
    %v508 = vsub.s32 %v505, %v507
    %v509 = vrot.slane %v501, %v508
    %v511 = vunpack.c.l.s4 1934713408
    %v512 = vunpack.c.0.s8 %v511
    %v513 = vlaneseq
    %v514 = vshrl.u32 %v513, 7
    %v515 = vsub.s32 %v512, %v514
    %v516 = vrot.slane %v502, %v515
    %v517 = vcombine.low %v452, %v468
    %v518 = vcombine.high %v452, %v468
    %v520 = vunpack.c.l.s4 1934713408
    %v521 = vunpack.c.0.s8 %v520
    %v522 = vlaneseq
    %v523 = vshrl.u32 %v522, 7
    %v524 = vsub.s32 %v521, %v523
    %v525 = vrot.slane %v517, %v524
    %v527 = vunpack.c.l.s4 1934713408
    %v528 = vunpack.c.0.s8 %v527
    %v529 = vlaneseq
    %v530 = vshrl.u32 %v529, 7
    %v531 = vsub.s32 %v528, %v530
    %v532 = vrot.slane %v518, %v531
    %v533 = vcombine.low %v477, %v493
    %v534 = vcombine.high %v477, %v493
    %v536 = vunpack.c.l.s4 1934713408
    %v537 = vunpack.c.0.s8 %v536
    %v538 = vlaneseq
    %v539 = vshrl.u32 %v538, 7
    %v540 = vsub.s32 %v537, %v539
    %v541 = vrot.slane %v533, %v540
    %v543 = vunpack.c.l.s4 1934713408
    %v544 = vunpack.c.0.s8 %v543
    %v545 = vlaneseq
    %v546 = vshrl.u32 %v545, 7
    %v547 = vsub.s32 %v544, %v546
    %v548 = vrot.slane %v534, %v547
    %v549 = vcombine.low %v484, %v500
    %v550 = vcombine.high %v484, %v500
    %v552 = vunpack.c.l.s4 1934713408
    %v553 = vunpack.c.0.s8 %v552
    %v554 = vlaneseq
    %v555 = vshrl.u32 %v554, 7
    %v556 = vsub.s32 %v553, %v555
    %v557 = vrot.slane %v549, %v556
    %v559 = vunpack.c.l.s4 1934713408
    %v560 = vunpack.c.0.s8 %v559
    %v561 = vlaneseq
    %v562 = vshrl.u32 %v561, 7
    %v563 = vsub.s32 %v560, %v562
    %v564 = vrot.slane %v550, %v563
    %v565 = vcombine.low %v509, %v541
    %v566 = vcombine.high %v509, %v541
    %v567 = vcombine.low %v516, %v548
    %v568 = vcombine.high %v516, %v548
    %v569 = vcombine.low %v525, %v557
    %v570 = vcombine.high %v525, %v557
    %v571 = vcombine.low %v532, %v564
    %v572 = vcombine.high %v532, %v564
    %v573 = vcombine.low %v422, %v426
    %v574 = vcombine.high %v422, %v426
    %v576 = vunpack.c.l.s4 1983009808
    %v577 = vunpack.c.0.s8 %v576
    %v578 = vlaneseq
    %v579 = vshrl.u32 %v578, 7
    %v580 = vsub.s32 %v577, %v579
    %v581 = vrot.slane %v573, %v580
    %v583 = vunpack.c.l.s4 1983009808
    %v584 = vunpack.c.0.s8 %v583
    %v585 = vlaneseq
    %v586 = vshrl.u32 %v585, 7
    %v587 = vsub.s32 %v584, %v586
    %v588 = vrot.slane %v574, %v587
    %v589 = vcombine.low %v424, %v428
    %v590 = vcombine.high %v424, %v428
    %v592 = vunpack.c.l.s4 1983009808
    %v593 = vunpack.c.0.s8 %v592
    %v594 = vlaneseq
    %v595 = vshrl.u32 %v594, 7
    %v596 = vsub.s32 %v593, %v595
    %v597 = vrot.slane %v589, %v596
    %v599 = vunpack.c.l.s4 1983009808
    %v600 = vunpack.c.0.s8 %v599
    %v601 = vlaneseq
    %v602 = vshrl.u32 %v601, 7
    %v603 = vsub.s32 %v600, %v602
    %v604 = vrot.slane %v590, %v603
    %v605 = vcombine.low %v430, %v434
    %v606 = vcombine.high %v430, %v434
    %v608 = vunpack.c.l.s4 1983009808
    %v609 = vunpack.c.0.s8 %v608
    %v610 = vlaneseq
    %v611 = vshrl.u32 %v610, 7
    %v612 = vsub.s32 %v609, %v611
    %v613 = vrot.slane %v605, %v612
    %v615 = vunpack.c.l.s4 1983009808
    %v616 = vunpack.c.0.s8 %v615
    %v617 = vlaneseq
    %v618 = vshrl.u32 %v617, 7
    %v619 = vsub.s32 %v616, %v618
    %v620 = vrot.slane %v606, %v619
    %v621 = vcombine.low %v432, %v436
    %v622 = vcombine.high %v432, %v436
    %v624 = vunpack.c.l.s4 1983009808
    %v625 = vunpack.c.0.s8 %v624
    %v626 = vlaneseq
    %v627 = vshrl.u32 %v626, 7
    %v628 = vsub.s32 %v625, %v627
    %v629 = vrot.slane %v621, %v628
    %v631 = vunpack.c.l.s4 1983009808
    %v632 = vunpack.c.0.s8 %v631
    %v633 = vlaneseq
    %v634 = vshrl.u32 %v633, 7
    %v635 = vsub.s32 %v632, %v634
    %v636 = vrot.slane %v622, %v635
    %v637 = vcombine.low %v581, %v597
    %v638 = vcombine.high %v581, %v597
    %v640 = vunpack.c.l.s4 1934713408
    %v641 = vunpack.c.0.s8 %v640
    %v642 = vlaneseq
    %v643 = vshrl.u32 %v642, 7
    %v644 = vsub.s32 %v641, %v643
    %v645 = vrot.slane %v637, %v644
    %v647 = vunpack.c.l.s4 1934713408
    %v648 = vunpack.c.0.s8 %v647
    %v649 = vlaneseq
    %v650 = vshrl.u32 %v649, 7
    %v651 = vsub.s32 %v648, %v650
    %v652 = vrot.slane %v638, %v651
    %v653 = vcombine.low %v588, %v604
    %v654 = vcombine.high %v588, %v604
    %v656 = vunpack.c.l.s4 1934713408
    %v657 = vunpack.c.0.s8 %v656
    %v658 = vlaneseq
    %v659 = vshrl.u32 %v658, 7
    %v660 = vsub.s32 %v657, %v659
    %v661 = vrot.slane %v653, %v660
    %v663 = vunpack.c.l.s4 1934713408
    %v664 = vunpack.c.0.s8 %v663
    %v665 = vlaneseq
    %v666 = vshrl.u32 %v665, 7
    %v667 = vsub.s32 %v664, %v666
    %v668 = vrot.slane %v654, %v667
    %v669 = vcombine.low %v613, %v629
    %v670 = vcombine.high %v613, %v629
    %v672 = vunpack.c.l.s4 1934713408
    %v673 = vunpack.c.0.s8 %v672
    %v674 = vlaneseq
    %v675 = vshrl.u32 %v674, 7
    %v676 = vsub.s32 %v673, %v675
    %v677 = vrot.slane %v669, %v676
    %v679 = vunpack.c.l.s4 1934713408
    %v680 = vunpack.c.0.s8 %v679
    %v681 = vlaneseq
    %v682 = vshrl.u32 %v681, 7
    %v683 = vsub.s32 %v680, %v682
    %v684 = vrot.slane %v670, %v683
    %v685 = vcombine.low %v620, %v636
    %v686 = vcombine.high %v620, %v636
    %v688 = vunpack.c.l.s4 1934713408
    %v689 = vunpack.c.0.s8 %v688
    %v690 = vlaneseq
    %v691 = vshrl.u32 %v690, 7
    %v692 = vsub.s32 %v689, %v691
    %v693 = vrot.slane %v685, %v692
    %v695 = vunpack.c.l.s4 1934713408
    %v696 = vunpack.c.0.s8 %v695
    %v697 = vlaneseq
    %v698 = vshrl.u32 %v697, 7
    %v699 = vsub.s32 %v696, %v698
    %v700 = vrot.slane %v686, %v699
    %v701 = vcombine.low %v645, %v677
    %v702 = vcombine.high %v645, %v677
    %v703 = vcombine.low %v652, %v684
    %v704 = vcombine.high %v652, %v684
    %v705 = vcombine.low %v661, %v693
    %v706 = vcombine.high %v661, %v693
    %v707 = vcombine.low %v668, %v700
    %v708 = vcombine.high %v668, %v700
    %710 = vrot.lane.b32.xlu0 %v566, 21
    %v711 = vpop.permute.xlu0 %710
    %714 = vrot.lane.b32.xlu0 %v567, 42
    %v715 = vpop.permute.xlu0 %714
    %718 = vrot.lane.b32.xlu0 %v568, 63
    %v719 = vpop.permute.xlu0 %718
    %722 = vrot.lane.b32.xlu0 %v569, 84
    %v723 = vpop.permute.xlu0 %722
    %726 = vrot.lane.b32.xlu0 %v570, 105
    %v727 = vpop.permute.xlu0 %726
    %730 = vrot.lane.b32.xlu0 %v571, 126
    %v731 = vpop.permute.xlu0 %730
    %734 = vrot.lane.b32.xlu0 %v572, 19
    %v735 = vpop.permute.xlu0 %734
    %738 = vrot.lane.b32.xlu0 %v701, 40
    %v739 = vpop.permute.xlu0 %738
    %742 = vrot.lane.b32.xlu0 %v702, 61
    %v743 = vpop.permute.xlu0 %742
    %746 = vrot.lane.b32.xlu0 %v703, 82
    %v747 = vpop.permute.xlu0 %746
    %750 = vrot.lane.b32.xlu0 %v704, 103
    %v751 = vpop.permute.xlu0 %750
    %754 = vrot.lane.b32.xlu0 %v705, 124
    %v755 = vpop.permute.xlu0 %754
    %758 = vrot.lane.b32.xlu0 %v706, 17
    %v759 = vpop.permute.xlu0 %758
    %762 = vrot.lane.b32.xlu0 %v707, 38
    %v763 = vpop.permute.xlu0 %762
    %766 = vrot.lane.b32.xlu0 %v708, 59
    %v767 = vpop.permute.xlu0 %766
    %vm769 = vcmask 171008
    %v770 = vsel %vm769, %v565, %v711
    %vm771 = vcmask 343040
    %v772 = vsel %vm771, %v770, %v715
    %vm773 = vcmask 515072
    %v774 = vsel %vm773, %v772, %v719
    %vm775 = vcmask 687104
    %v776 = vsel %vm775, %v774, %v723
    %vm777 = vcmask 859136
    %v778 = vsel %vm777, %v776, %v727
    %vm779 = vcmask 1031168
    %v780 = vsel %vm779, %v778, %v731
    %vm781 = vcmask 154624
    %v782 = vsel %vm781, %v731, %v735
    %vm783 = vcmask 326656
    %v784 = vsel %vm783, %v782, %v739
    %vm785 = vcmask 498688
    %v786 = vsel %vm785, %v784, %v743
    %vm787 = vcmask 670720
    %v788 = vsel %vm787, %v786, %v747
    %vm789 = vcmask 842752
    %v790 = vsel %vm789, %v788, %v751
    %vm791 = vcmask 1014784
    %v792 = vsel %vm791, %v790, %v755
    %vm793 = vcmask 138240
    %v794 = vsel %vm793, %v755, %v759
    %vm795 = vcmask 310272
    %v796 = vsel %vm795, %v794, %v763
    %vm797 = vcmask 482304
    %v798 = vsel %vm797, %v796, %v767
    %802 = vrot.lane.b32.xlu0 %v780, 21
    %v803 = vpop.permute.xlu0 %802
    %804 = vrot.lane.b32.xlu0 %v792, 21
    %v805 = vpop.permute.xlu0 %804
    %806 = vrot.lane.b32.xlu0 %v798, 21
    %v807 = vpop.permute.xlu0 %806
    %v808 = vsel %vm769, %v803, %v805
    %v809 = vsel %vm769, %v805, %v807
    %v813 = vsel %vm769, 0.0, %v803
    %vm814 = vcmask 826368
    %v815 = vsel %vm814, %v809, 0.0
    %816 = vst [vmem:[#allocation5] sm:$0xff] %v813
    %817 = vst [vmem:[#allocation5 + $0x8] sm:$0xff] %v808
    %818 = vst [vmem:[#allocation5 + $0x10] sm:$0xff] %v815
    %vm819 = vcmask 121856
    %820 = vst.msk [vmem:[#allocation5 + $0x18] sm:$0xff] %vm819, 0.0
    // Predicated region
    $region10: #{tpu_custom_call.1} parent=1 // pred_check
      _
    $region11: #{tpu_custom_call.1} parent=1 // pred_check_branch
      %822 = sbr.rel (0) target = $region13
    $region12: #{tpu_custom_call.1} parent=1 // pred_region
      %s824 = ssub.s32 512, 512
      %825 = vsyncadd [#allocation4], %s824
      %s827 = sshll.u32 [#allocation5], 4
      %s828 = int_to_ptr.vmem [resolvable:$true] %s827
      %830 = dma.vmem_to_hbm [thread:$0]  %s828, 512, %s1, [#allocation4]
    $region13: #{tpu_custom_call.1} parent=1 // pred_fallthru
      _
    // Predicated region
    $region14: #{tpu_custom_call.1} parent=1 // pred_check
      _
    $region15: #{tpu_custom_call.1} parent=1 // pred_check_branch
      %832 = sbr.rel (0) target = $region17
    $region16: #{tpu_custom_call.1} parent=1 // pred_region
      %833 = dma.done [#allocation4], 512
    $region17: #{tpu_custom_call.1} parent=1 // pred_fallthru
      _
    %834 = vsyncpa [#allocation3], 1
    %835 = vsyncpa [#allocation4], 1

</llo_original>
